<compile_context>
chip_gen: v7x
topology: tpu7x:2x2x1
jax: 0.10.0
libtpu: 0.0.40
codegen_flags: <defaults>
</compile_context>

<pallas_src>
import functools

import jax
import jax.numpy as jnp
from jax.experimental import pallas as pl
from jax.experimental.pallas import tpu as pltpu


def _round_up(a, b):
    return (a + b - 1) // b * b


def _gin_block_kernel(x_ref, w_ref, s_ref, o_ref, *, tap_offsets, tile, use_act):
    # x_ref: (1, 1, nc, tile + 2*halo)  bf16  -- flat padded-image window (with halo)
    # w_ref: (1, out_c, kk*nc)          bf16  -- fused grouped-conv weights (resident)
    # s_ref: (1, out_c, 1)              f32   -- per-(batch, out-channel) shift (resident)
    # o_ref: (1, out_c, tile)           f32   -- lane-dense output tile
    xwin = x_ref[0, 0].astype(jnp.float32)                 # (nc, tile + 2*halo)

    # Build the (kk*nc, tile) contraction matrix with STATIC lane slices of the
    # resident window -- no k*k im2col materialization in HBM.
    slabs = [xwin[:, off:off + tile] for off in tap_offsets]
    kmat = jnp.concatenate(slabs, axis=0) if len(slabs) > 1 else slabs[0]
    kmat = kmat.astype(jnp.bfloat16)                       # (kk*nc, tile)

    # Single fused MXU matmul, K = k*k*nc, f32 accumulation.
    acc = jnp.dot(w_ref[0], kmat, preferred_element_type=jnp.float32)  # (out_c, tile)
    acc = acc + s_ref[0]                                   # shift, broadcast over lanes
    if use_act:
        acc = jnp.where(acc > 0, acc, 0.01 * acc)          # F.leaky_relu default slope
    o_ref[0] = acc.astype(o_ref.dtype)


def gradless_gc_replay_nonlin_block(x_nchw, ker, shift, k, use_act=True,
                                    max_tile=2048):
    """Matches GradlessGCReplayNonlinBlock.forward (2D branch).

    Args:
      x_nchw: (nb, nc, nx, ny) float32   -- PyTorch NCHW input
      ker:    (out_channel * nb, nc, k, k)  -- grouped conv weights
      shift:  (out_channel * nb, 1, 1)      -- per-channel shift
      k:      kernel size (drawn from scale_pool)
    Returns:
      (nb, out_channel, nx, ny) float32  (NCHW, like the PyTorch module)
    """
    nb, nc, nx, ny = x_nchw.shape
    out_c = ker.shape[0] // nb
    pad = k // 2
    kk = k * k

    nx_p, ny_p = nx + 2 * pad, ny + 2 * pad
    L = nx_p * ny_p                          # flattened padded-grid size
    halo = pad * ny_p + pad                  # max |flat tap offset|
    tile = min(max_tile, _round_up(L, 128))  # lane-dense tile (multiple of 128)
    Lp = _round_up(L, tile)
    n_tiles = Lp // tile
    twin = tile + 2 * halo                   # per-tile window incl. halo

    # Flat tap offsets (relative to the window start), tap-major order.
    tap_offsets = tuple((dy - pad) * ny_p + (dx - pad) + halo
                        for dy in range(k) for dx in range(k))

    # ---- glue: layout prep in plain JAX (bf16 for the DMA/MXU path) ----
    x_pad = jnp.pad(x_nchw.astype(jnp.float32),
                    ((0, 0), (0, 0), (pad, pad), (pad, pad)))
    flat = x_pad.reshape(nb, nc, L)
    flat2 = jnp.pad(flat, ((0, 0), (0, 0), (halo, (Lp - L) + halo)))
    flat2 = flat2.astype(jnp.bfloat16)       # (nb, nc, Lp + 2*halo)
    # Per-tile windows with halo (only the halos are duplicated, not k*k copies).
    tiles = jnp.stack([flat2[:, :, h * tile: h * tile + twin]
                       for h in range(n_tiles)], axis=1)    # (nb, n_tiles, nc, twin)

    # Weights: (out_c*nb, nc, k, k) -> (nb, out_c, kk*nc), row index = tap*nc + c.
    w = ker.reshape(nb, out_c, nc, k, k).astype(jnp.bfloat16)
    w = jnp.transpose(w, (0, 1, 3, 4, 2)).reshape(nb, out_c, kk * nc)
    s = shift.reshape(nb, out_c, 1).astype(jnp.float32)

    # ---- Pallas kernel: fused conv matmul + shift + leaky relu ----
    kernel = functools.partial(_gin_block_kernel, tap_offsets=tap_offsets,
                               tile=tile, use_act=use_act)
    out = pl.pallas_call(
        kernel,
        out_shape=jax.ShapeDtypeStruct((nb, out_c, Lp), jnp.float32),
        grid_spec=pltpu.PrefetchScalarGridSpec(
            num_scalar_prefetch=0,
            grid=(nb, n_tiles),
            in_specs=[
                pl.BlockSpec((1, 1, nc, twin), lambda b, h: (b, h, 0, 0)),
                pl.BlockSpec((1, out_c, kk * nc), lambda b, h: (b, 0, 0)),
                pl.BlockSpec((1, out_c, 1), lambda b, h: (b, 0, 0)),
            ],
            out_specs=pl.BlockSpec((1, out_c, tile), lambda b, h: (b, 0, h)),
        ),
        compiler_params=pltpu.CompilerParams(
            dimension_semantics=("parallel", "parallel")),
    )(tiles, w, s)

    # Crop the padded flat grid back to the interior; already NCHW.
    out = out[:, :, :L].reshape(nb, out_c, nx_p, ny_p)
    return out[:, :, pad:pad + nx, pad:pad + ny]


def _reference(x, ker, shift, k, use_act=True):
    """Pure-JAX reference mirroring the PyTorch code exactly."""
    nb, nc, nx, ny = x.shape
    out_c = ker.shape[0] // nb
    x_r = x.reshape(1, nb * nc, nx, ny)
    y = jax.lax.conv_general_dilated(
        x_r, ker, window_strides=(1, 1),
        padding=[(k // 2, k // 2), (k // 2, k // 2)],
        dimension_numbers=('NCHW', 'OIHW', 'NCHW'),
        feature_group_count=nb)
    y = y + shift[None]          # (1, nb*out, nx, ny) + (1, nb*out, 1, 1)
    if use_act:
        y = jnp.where(y > 0, y, 0.01 * y)
    return y.reshape(nb, out_c, nx, ny)


if __name__ == "__main__":
    key = jax.random.PRNGKey(0)
    nb, nc, nx, ny = 2, 3, 16, 16
    out_channel = 32
    scale_pool = [1, 3]

    for k in scale_pool:   # exercise both the k=1 (degenerate) and k=3 paths
        x_key, w_key, s_key = jax.random.split(jax.random.fold_in(key, k), 3)
        x = jax.random.normal(x_key, (nb, nc, nx, ny), dtype=jnp.float32)
        # torch.randn([out_channel*nb, in_channel, k, k]) / torch.randn([out_channel*nb,1,1])
        ker = jax.random.normal(w_key, (out_channel * nb, nc, k, k), dtype=jnp.float32)
        shift = jax.random.normal(s_key, (out_channel * nb, 1, 1), dtype=jnp.float32) * 1.0

        y = gradless_gc_replay_nonlin_block(x, ker, shift, k, use_act=True)
        y = jax.block_until_ready(y)
        assert y.shape == (nb, out_channel, nx, ny), y.shape

        # Reference on the same bf16-rounded operands (kernel feeds the MXU bf16
        # inputs with f32 accumulation), so the comparison stays tight.
        x_r = x.astype(jnp.bfloat16).astype(jnp.float32)
        k_r = ker.astype(jnp.bfloat16).astype(jnp.float32)
        y_ref = jax.block_until_ready(_reference(x_r, k_r, shift, k, use_act=True))
        assert jnp.allclose(y, y_ref, atol=2e-3, rtol=2e-3), \
            float(jnp.max(jnp.abs(y - y_ref)))

    print("KERNEL_OK")
</pallas_src>

<mosaic_0001>
module attributes {stable_mosaic.version = 11 : i64} {
  func.func @_gin_block_kernel(%arg0: i32, %arg1: i32, %arg2: memref<1x1x3x256xbf16, #tpu.memory_space<vmem>>, %arg3: memref<1x32x3xbf16, #tpu.memory_space<vmem>>, %arg4: memref<1x32x1xf32, #tpu.memory_space<vmem>>, %arg5: memref<1x32x256xf32, #tpu.memory_space<vmem>>) attributes {dimension_semantics = [#tpu.dimension_semantics<parallel>, #tpu.dimension_semantics<parallel>], iteration_bounds = array<i64: 2, 1>, scalar_prefetch = 0 : i64, scratch_operands = 0 : i64, tpu.core_type = #tpu.core_type<tc>, window_params = [{transform_indices = @transform_0, window_bounds = array<i64: 1, 1, 3, 256>}, {transform_indices = @transform_1, window_bounds = array<i64: 1, 32, 3>}, {transform_indices = @transform_2, window_bounds = array<i64: 1, 32, 1>}, {transform_indices = @transform_3, window_bounds = array<i64: 1, 32, 256>}]} {
    %c0 = arith.constant 0 : index
    %c0_0 = arith.constant 0 : index
    %c0_1 = arith.constant 0 : index
    %c0_2 = arith.constant 0 : index
    %0 = vector.load %arg2[%c0, %c0_0, %c0_1, %c0_2] : memref<1x1x3x256xbf16, #tpu.memory_space<vmem>>, vector<1x1x3x256xbf16>
    %1 = vector.shape_cast %0 : vector<1x1x3x256xbf16> to vector<3x256xbf16>
    %2 = arith.extf %1 : vector<3x256xbf16> to vector<3x256xf32>
    %3 = arith.truncf %2 : vector<3x256xf32> to vector<3x256xbf16>
    %c0_3 = arith.constant 0 : index
    %c0_4 = arith.constant 0 : index
    %c0_5 = arith.constant 0 : index
    %4 = vector.load %arg3[%c0_3, %c0_4, %c0_5] : memref<1x32x3xbf16, #tpu.memory_space<vmem>>, vector<1x32x3xbf16>
    %5 = vector.shape_cast %4 : vector<1x32x3xbf16> to vector<32x3xbf16>
    %cst = arith.constant dense<0.000000e+00> : vector<32x256xf32>
    %6 = tpu.matmul %5, %3, %cst {dimension_numbers = #tpu.dot_dimension_numbers<[1], [0], [0], [1], [0, 0, 1, 1], [], []>} : vector<32x3xbf16>, vector<3x256xbf16>, vector<32x256xf32> -> vector<32x256xf32>
    %c0_6 = arith.constant 0 : index
    %c0_7 = arith.constant 0 : index
    %c0_8 = arith.constant 0 : index
    %7 = vector.load %arg4[%c0_6, %c0_7, %c0_8] : memref<1x32x1xf32, #tpu.memory_space<vmem>>, vector<1x32x1xf32>
    %8 = vector.shape_cast %7 : vector<1x32x1xf32> to vector<32x1xf32>
    %9 = vector.broadcast %8 : vector<32x1xf32> to vector<32x256xf32>
    %10 = arith.addf %6, %9 : vector<32x256xf32>
    %cst_9 = arith.constant 0.000000e+00 : f32
    %11 = vector.broadcast %cst_9 : f32 to vector<32x256xf32>
    %12 = arith.cmpf ogt, %10, %11 : vector<32x256xf32>
    %cst_10 = arith.constant 0.00999999977 : f32
    %13 = vector.broadcast %cst_10 : f32 to vector<32x256xf32>
    %14 = arith.mulf %13, %10 : vector<32x256xf32>
    %15 = arith.select %12, %10, %14 : vector<32x256xi1>, vector<32x256xf32>
    %c0_11 = arith.constant 0 : index
    %c0_12 = arith.constant 0 : index
    %c0_13 = arith.constant 0 : index
    %16 = vector.load %arg5[%c0_11, %c0_12, %c0_13] : memref<1x32x256xf32, #tpu.memory_space<vmem>>, vector<1x32x256xf32>
    %17 = vector.shape_cast %16 : vector<1x32x256xf32> to vector<32x256xf32>
    %18 = vector.shape_cast %15 : vector<32x256xf32> to vector<1x32x256xf32>
    tpu.vector_store %arg5[%c0_11, %c0_12, %c0_13], %18 {strides = array<i32>} : memref<1x32x256xf32, #tpu.memory_space<vmem>>, vector<1x32x256xf32>,
    return
  }
  func.func @transform_0(%arg0: i32, %arg1: i32) -> (i32, i32, i32, i32) {
    %c0_i32 = arith.constant 0 : i32
    %c0_i32_0 = arith.constant 0 : i32
    %c0_i32_1 = arith.constant 0 : i32
    return %arg0, %arg1, %c0_i32, %c0_i32_0 : i32, i32, i32, i32
  }
  func.func @transform_1(%arg0: i32, %arg1: i32) -> (i32, i32, i32) {
    %c0_i32 = arith.constant 0 : i32
    %c0_i32_0 = arith.constant 0 : i32
    %c0_i32_1 = arith.constant 0 : i32
    return %arg0, %c0_i32, %c0_i32_0 : i32, i32, i32
  }
  func.func @transform_2(%arg0: i32, %arg1: i32) -> (i32, i32, i32) {
    %c0_i32 = arith.constant 0 : i32
    %c0_i32_0 = arith.constant 0 : i32
    %c0_i32_1 = arith.constant 0 : i32
    return %arg0, %c0_i32, %c0_i32_0 : i32, i32, i32
  }
  func.func @transform_3(%arg0: i32, %arg1: i32) -> (i32, i32, i32) {
    %c0_i32 = arith.constant 0 : i32
    %c0_i32_0 = arith.constant 0 : i32
    return %arg0, %c0_i32, %arg1 : i32, i32, i32
  }
}

</mosaic_0001>

<llo_original>
// kernel: tpu_custom_call.1
$region0: #{tpu_custom_call.1}
  #allocation0 [shape = 'u32[]', space=smem, size = 0x4, offset = 0x4, fixed_abs, tag = 'smem constant byte address 0x4 - core index']
  #allocation1 [shape = 'u32[144,128]{1,0:T(1,128)}', space=vmem, size = 0x12000, scoped, tag = 'internal scratch']
  %s0 = inlined_call_operand.vmem [shape: bf16[2,1,3,256], index: 0, kind: input, shape index: {}]
  %s1 = inlined_call_operand.vmem [shape: bf16[2,32,3], index: 1, kind: input, shape index: {}]
  %s2 = inlined_call_operand.vmem [shape: f32[2,32,1], index: 2, kind: input, shape index: {}]
  %s3 = inlined_call_operand.hbm [shape: f32[2,32,256], index: 3, kind: output, shape index: {}]
  %s4 = sld [smem:[#allocation0]]
  $region45: #{tpu_custom_call.1} parent=0
    _
  %s6 = ssub.s32 1, %s4
  %s7 = scalar_select 0, %s6, %s4
  $region1: #{tpu_custom_call.1} parent=0
    #allocation2 [shape = 'u8[65536]{0}', space=vmem, size = 0x10000, scoped, tag = 'output window, operand 0']
    #allocation3 [shape = 's32[2]{0}', space=sflag, size = 0x8, scoped, tag = 'scoped memory for tpu_custom_call.1']
    %8 = vsyncpa [#allocation3], 0
    %s9 = scalar_lea.sflag [#allocation3], 1
    %10 = vsyncpa %s9, 0
    loop: start=0, step=1, limit=4
    $region2: #{tpu_custom_call.1} parent=1 // loop_pre_header
      _
    $region3: #{tpu_custom_call.1} parent=1 // loop_header
      %s12 = sphi 0, %s16
      %p13 = scmp.ge.s32.totalorder %s12, 4
      %s19 = sphi 0, %s31
      %s20 = sphi 0, %s27
      %s21 = sphi 0, %s19
      %s22 = sphi 0, %s20
      %s23 = sphi 0, %s21
      %s24 = sphi 0, %s22
      %s36 = sphi 0, %s38
      %s39 = sphi 0, %s36
      %s40 = sphi 0, %s39
      %s56 = sphi 0, %s40
      %s62 = sphi 0, %s64
      %s65 = sphi 0, %s62
      %s66 = sphi 0, %s65
      %s82 = sphi 0, %s66
      %s88 = sphi 0, %s90
      %s91 = sphi 0, %s88
      %s92 = sphi 0, %s91
      %s108 = sphi 0, %s92
      %s116 = sphi 0, %s118
      %s119 = sphi 0, %s116
      %s120 = sphi 0, %s119
      %s136 = sphi 0, %s120
    $region4: #{tpu_custom_call.1} parent=1 // loop_header_branch
      %15 = sbr.rel (%p13) target = $region8
    $region5: #{tpu_custom_call.1} parent=1 // loop_body
      %s17 = ssub.s32 %s12, 1
      %s18 = ssub.s32 %s12, 2
      %s25 = sadd.s32 1, %s20
      %p26 = scmp.ge.s32.totalorder %s25, 1
      %s27 = scalar_select %p26, 0, %s25
      %s28 = sadd.s32 1, %s19
      %s29 = scalar_select %p26, %s28, %s19
      %p30 = scmp.ge.s32.totalorder %s29, 2
      %s31 = scalar_select %p30, 0, %s29
      %s32 = ssub.s32 %s19, %s31
      %s33 = ssub.s32 %s20, %s27
      %s34 = sor.u32 %s32, %s33
      %p35 = scmp.eq.s32.totalorder %s34, 0
      %s37 = sadd.s32 %s36, 1
      %s38 = scalar_select %p35, %s36, %s37
      %p41 = pneg %p35
      %p42 = scmp.eq.s32.totalorder %s12, 1
      %p43 = por %p41, %p42
      %p44 = scmp.ne.s32.totalorder %s36, %s39
      %p45 = scmp.eq.s32.totalorder %s12, 0
      %p46 = por %p44, %p45
      %p47 = scmp.ne.s32.totalorder %s36, %s39
      %p48 = scmp.eq.s32.totalorder %s17, 1
      %p49 = por %p47, %p48
      %p50 = scmp.ne.s32.totalorder %s39, %s40
      %p51 = scmp.eq.s32.totalorder %s17, 0
      %p52 = por %p50, %p51
      %p53 = scmp.ne.s32.totalorder %s39, %s40
      %p54 = scmp.eq.s32.totalorder %s18, 1
      %p55 = por %p53, %p54
      %p57 = scmp.ne.s32.totalorder %s40, %s56
      %p58 = scmp.eq.s32.totalorder %s18, 0
      %p59 = por %p57, %p58
      %s60 = ssub.s32 %s19, %s31
      %p61 = scmp.eq.s32.totalorder %s60, 0
      %s63 = sadd.s32 %s62, 1
      %s64 = scalar_select %p61, %s62, %s63
      %p67 = pneg %p61
      %p68 = scmp.eq.s32.totalorder %s12, 1
      %p69 = por %p67, %p68
      %p70 = scmp.ne.s32.totalorder %s62, %s65
      %p71 = scmp.eq.s32.totalorder %s12, 0
      %p72 = por %p70, %p71
      %p73 = scmp.ne.s32.totalorder %s62, %s65
      %p74 = scmp.eq.s32.totalorder %s17, 1
      %p75 = por %p73, %p74
      %p76 = scmp.ne.s32.totalorder %s65, %s66
      %p77 = scmp.eq.s32.totalorder %s17, 0
      %p78 = por %p76, %p77
      %p79 = scmp.ne.s32.totalorder %s65, %s66
      %p80 = scmp.eq.s32.totalorder %s18, 1
      %p81 = por %p79, %p80
      %p83 = scmp.ne.s32.totalorder %s66, %s82
      %p84 = scmp.eq.s32.totalorder %s18, 0
      %p85 = por %p83, %p84
      %s86 = ssub.s32 %s19, %s31
      %p87 = scmp.eq.s32.totalorder %s86, 0
      %s89 = sadd.s32 %s88, 1
      %s90 = scalar_select %p87, %s88, %s89
      %p93 = pneg %p87
      %p94 = scmp.eq.s32.totalorder %s12, 1
      %p95 = por %p93, %p94
      %p96 = scmp.ne.s32.totalorder %s88, %s91
      %p97 = scmp.eq.s32.totalorder %s12, 0
      %p98 = por %p96, %p97
      %p99 = scmp.ne.s32.totalorder %s88, %s91
      %p100 = scmp.eq.s32.totalorder %s17, 1
      %p101 = por %p99, %p100
      %p102 = scmp.ne.s32.totalorder %s91, %s92
      %p103 = scmp.eq.s32.totalorder %s17, 0
      %p104 = por %p102, %p103
      %p105 = scmp.ne.s32.totalorder %s91, %s92
      %p106 = scmp.eq.s32.totalorder %s18, 1
      %p107 = por %p105, %p106
      %p109 = scmp.ne.s32.totalorder %s92, %s108
      %p110 = scmp.eq.s32.totalorder %s18, 0
      %p111 = por %p109, %p110
      %s112 = ssub.s32 %s19, %s31
      %s113 = ssub.s32 %s20, %s27
      %s114 = sor.u32 %s112, %s113
      %p115 = scmp.eq.s32.totalorder %s114, 0
      %s117 = sadd.s32 %s116, 1
      %s118 = scalar_select %p115, %s116, %s117
      %p121 = pneg %p115
      %p122 = scmp.eq.s32.totalorder %s12, 1
      %p123 = por %p121, %p122
      %p124 = scmp.ne.s32.totalorder %s116, %s119
      %p125 = scmp.eq.s32.totalorder %s12, 0
      %p126 = por %p124, %p125
      %p127 = scmp.ne.s32.totalorder %s116, %s119
      %p128 = scmp.eq.s32.totalorder %s17, 1
      %p129 = por %p127, %p128
      %p130 = scmp.ne.s32.totalorder %s119, %s120
      %p131 = scmp.eq.s32.totalorder %s17, 0
      %p132 = por %p130, %p131
      %p133 = scmp.ne.s32.totalorder %s119, %s120
      %p134 = scmp.eq.s32.totalorder %s18, 1
      %p135 = por %p133, %p134
      %p137 = scmp.ne.s32.totalorder %s120, %s136
      %p138 = scmp.eq.s32.totalorder %s18, 0
      %p139 = por %p137, %p138
      %p140 = scmp.le.s32.totalorder 1, %s12
      %p141 = scmp.lt.s32.totalorder %s12, 3
      %p142 = pnand %p140, %p141
      %p143 = pneg %p142
      // Predicated region
      $region9: #{tpu_custom_call.1} parent=5 // pred_check
        _
      $region10: #{tpu_custom_call.1} parent=5 // pred_check_branch
        %145 = sbr.rel (%p142) target = $region12
      $region11: #{tpu_custom_call.1} parent=5 // pred_region
        %s146 = ssub.s32 %s12, 1
      $region12: #{tpu_custom_call.1} parent=5 // pred_fallthru
        _
      %p147 = scmp.lt.s32.totalorder %s12, 2
      // Predicated region
      $region13: #{tpu_custom_call.1} parent=5 // pred_check
        %p148 = pneg %p147
      $region14: #{tpu_custom_call.1} parent=5 // pred_check_branch
        %150 = sbr.rel (%p148) target = $region16
      $region15: #{tpu_custom_call.1} parent=5 // pred_region
        // Predicated region
        $region17: #{tpu_custom_call.1} parent=15 // pred_check
          %p151 = pneg %p46
        $region18: #{tpu_custom_call.1} parent=15 // pred_check_branch
          %153 = sbr.rel (%p151) target = $region20
        $region19: #{tpu_custom_call.1} parent=15 // pred_region
          %p154 = scmp.lt.s32.totalorder %s19, 1
          %s155 = scalar_select %p154, %s19, 1
          %p156 = scmp.lt.s32.totalorder %s20, 0
          %s157 = scalar_select %p156, %s20, 0
          %s158 = smul.addr %s157, 2
          %s159 = smul.addr %s155, 2
          %s160 = sadd.s32 %s158, %s159
          %s161 = smul.addr %s160, 2
          %s162 = scalar_lea.vmem %s0, %s161
        $region20: #{tpu_custom_call.1} parent=15 // pred_fallthru
          _
        // Predicated region
        $region21: #{tpu_custom_call.1} parent=15 // pred_check
          %p163 = pneg %p72
        $region22: #{tpu_custom_call.1} parent=15 // pred_check_branch
          %165 = sbr.rel (%p163) target = $region24
        $region23: #{tpu_custom_call.1} parent=15 // pred_region
          %p166 = scmp.lt.s32.totalorder %s19, 1
          %s167 = scalar_select %p166, %s19, 1
          %s168 = smul.addr %s167, 4
          %s169 = smul.addr %s168, 4
          %s170 = scalar_lea.vmem %s1, %s169
        $region24: #{tpu_custom_call.1} parent=15 // pred_fallthru
          _
        // Predicated region
        $region25: #{tpu_custom_call.1} parent=15 // pred_check
          %p171 = pneg %p98
        $region26: #{tpu_custom_call.1} parent=15 // pred_check_branch
          %173 = sbr.rel (%p171) target = $region28
        $region27: #{tpu_custom_call.1} parent=15 // pred_region
          %p174 = scmp.lt.s32.totalorder %s19, 1
          %s175 = scalar_select %p174, %s19, 1
          %s176 = smul.addr %s175, 4
          %s177 = smul.addr %s176, 8
          %s178 = scalar_lea.vmem %s2, %s177
        $region28: #{tpu_custom_call.1} parent=15 // pred_fallthru
          _
      $region16: #{tpu_custom_call.1} parent=5 // pred_fallthru
        _
      %p179 = scmp.le.s32.totalorder 1, %s12
      %p180 = scmp.lt.s32.totalorder %s12, 3
      %p181 = pnand %p179, %p180
      %p182 = pneg %p181
      // Predicated region
      $region29: #{tpu_custom_call.1} parent=5 // pred_check
        _
      $region30: #{tpu_custom_call.1} parent=5 // pred_check_branch
        %184 = sbr.rel (%p181) target = $region32
      $region31: #{tpu_custom_call.1} parent=5 // pred_region
        %s185 = ssub.s32 %s12, 1
        %p186 = scmp.lt.s32.totalorder %s21, 1
        %s187 = scalar_select %p186, %s21, 1
        %p188 = scmp.lt.s32.totalorder %s22, 0
        %s189 = scalar_select %p188, %s22, 0
        %s190 = smul.addr %s189, 2
        %s191 = smul.addr %s187, 2
        %s192 = sadd.s32 %s190, %s191
        %s193 = smul.addr %s192, 2
        %s194 = scalar_lea.vmem %s0, %s193
        %p195 = pneg %p52
        %p196 = pneg %p49
        %p197 = scmp.lt.s32.totalorder %s21, 1
        %s198 = scalar_select %p197, %s21, 1
        %s199 = smul.addr %s198, 4
        %s200 = smul.addr %s199, 4
        %s201 = scalar_lea.vmem %s1, %s200
        %p202 = pneg %p78
        %p203 = pneg %p75
        %p204 = scmp.lt.s32.totalorder %s21, 1
        %s205 = scalar_select %p204, %s21, 1
        %s206 = smul.addr %s205, 4
        %s207 = smul.addr %s206, 8
        %s208 = scalar_lea.vmem %s2, %s207
        %p209 = pneg %p104
        %p210 = pneg %p101
        %p211 = pneg %p132
        %p212 = pneg %p129
        %s213 = sand.u32 %s119, 1
        %s214 = scalar_lea.sflag [#allocation3], %s213
        %s215 = sand.u32 %s119, 1
        %s216 = smul.addr %s215, 64
        %s217 = scalar_lea.vmem [#allocation2], %s216
        %p218 = scmp.lt.s32.totalorder %s21, 1
        %s219 = scalar_select %p218, %s21, 1
        %p220 = scmp.lt.s32.totalorder %s22, 0
        %s221 = scalar_select %p220, %s22, 0
        %s222 = smul.addr %s221, 2
        %s223 = smul.addr %s219, 2
        %s224 = sadd.s32 %s222, %s223
        %s225 = smul.addr %s224, 2
        %s226 = scalar_lea.vmem %s0, %s225
        %p227 = scmp.lt.s32.totalorder %s21, 1
        %s228 = scalar_select %p227, %s21, 1
        %s229 = smul.addr %s228, 4
        %s230 = smul.addr %s229, 4
        %s231 = scalar_lea.vmem %s1, %s230
        %p232 = scmp.lt.s32.totalorder %s21, 1
        %s233 = scalar_select %p232, %s21, 1
        %s234 = smul.addr %s233, 4
        %s235 = smul.addr %s234, 8
        %s236 = scalar_lea.vmem %s2, %s235
        %s237 = smul.u32 2, %s22
        %v239 = vld [vmem:[%s226] sm:$0xf]
        %v240 = vld [vmem:[%s231] sm:$0xf]
        %v241 = vld [vmem:[%s231 + $0x4] sm:$0xf]
        %v242 = vld [vmem:[%s231 + $0x8] sm:$0xf]
        %v243 = vld [vmem:[%s231 + $0xc] sm:$0xf]
        %v244 = vld [vmem:[%s236] sm:$0xff]
        %v245 = vld [vmem:[%s236 + $0x8] sm:$0xff]
        %v246 = vld [vmem:[%s236 + $0x10] sm:$0xff]
        %v247 = vld [vmem:[%s236 + $0x18] sm:$0xff]
        %249 = vset.pattern.permute.xlu0 0
        %250 = vperm.xlu0 %249, %v244
        %v251 = vpop.permute.xlu0 %250
        %254 = vset.pattern.permute.xlu0 0
        %255 = vperm.xlu0 %254, %v245
        %v256 = vpop.permute.xlu0 %255
        %259 = vset.pattern.permute.xlu0 0
        %260 = vperm.xlu0 %259, %v246
        %v261 = vpop.permute.xlu0 %260
        %264 = vset.pattern.permute.xlu0 0
        %265 = vperm.xlu0 %264, %v247
        %v266 = vpop.permute.xlu0 %265
        %v272 = vunpack.c.l.b16 %v240
        %v273 = vunpack.c.l.b16 %v241
        %v274 = vunpack.c.l.b16 %v242
        %v275 = vunpack.c.l.b16 %v243
        %v276 = vpack.c.b16 %v273, %v272
        %v277 = vpack.c.b16 %v275, %v274
        %v280 = vunpack.c.l.s4 1983009808
        %v281 = vunpack.c.0.s8 %v280
        %v282 = vlaneseq
        %v283 = vshrl.u32 %v282, 7
        %v284 = vsub.s32 %v281, %v283
        %v285 = vrot.slane %v239, %v284
        %v286 = vcombine.high %v285, %v285
        %vm287 = vcmask 23552
        %v289 = vsel %vm287, %v276, 0
        %v292 = vsel %vm287, %v277, 0
        %vm294 = vcmask 1040384
        %vm295 = vcmask 1041408
        %v296 = vsel %vm294, 4294967295, 65535
        %v297 = vsel %vm295, %v296, 0
        %v299 = vand.u32 %v285, %v297
        %v302 = vand.u32 %v286, %v297
        %304 = vmatprep.subr.bf16.mxu0 %v302
        %305 = vmatpush1.bf16.msra.mxu0 %v299
        %306 = vmatprep.subr.bf16.mxu0 0
        %307 = vmatpush1.bf16.msra.mxu0 0
        %308 = vmatprep.subr.bf16.mxu0 0
        %309 = vmatpush1.bf16.msra.mxu0 0
        %310 = vmatprep.subr.bf16.mxu0 0
        %311 = vmatpush1.bf16.msra.mxu0 0
        %312 = vmatprep.subr.bf16.mxu0 0
        %313 = vmatpush1.bf16.msra.mxu0 0
        %314 = vmatprep.subr.bf16.mxu0 0
        %315 = vmatpush1.bf16.msra.mxu0 0
        %316 = vmatprep.subr.bf16.mxu0 0
        %317 = vmatpush1.bf16.msra.mxu0 0
        %318 = vmatprep.subr.bf16.mxu0 0
        %319 = vmatpush1.bf16.msra.mxu0 0
        %320 = vmatprep.subr.bf16.mxu0 0
        %321 = vmatpush1.bf16.msra.mxu0 0
        %322 = vmatprep.subr.bf16.mxu0 0
        %323 = vmatpush1.bf16.msra.mxu0 0
        %324 = vmatprep.subr.bf16.mxu0 0
        %325 = vmatpush1.bf16.msra.mxu0 0
        %326 = vmatprep.subr.bf16.mxu0 0
        %327 = vmatpush1.bf16.msra.mxu0 0
        %328 = vmatprep.subr.bf16.mxu0 0
        %329 = vmatpush1.bf16.msra.mxu0 0
        %330 = vmatprep.subr.bf16.mxu0 0
        %331 = vmatpush1.bf16.msra.mxu0 0
        %332 = vmatprep.subr.bf16.mxu0 0
        %333 = vmatpush1.bf16.msra.mxu0 0
        %334 = vmatprep.subr.bf16.mxu0 0
        %335 = vmatpush1.bf16.msra.mxu0 0
        %336 = vmatprep.mubr.bf16.mxu0 0
        %337 = vmatmul.mubr.bf16.gmra.mrb[0].mxu0 %v289
        %v338 = vpop.f32.mrb[0].mxu0
        %v339 = vadd.f32 %v251, %v338
        %v340 = vpop.f32.mrb[0].mxu0
        %v341 = vadd.f32 %v251, %v340
        %v342 = vpop.f32.mrb[0].mxu0
        %v343 = vadd.f32 %v256, %v342
        %v344 = vpop.f32.mrb[0].mxu0
        %v345 = vadd.f32 %v256, %v344
        %346 = vmatprep.mubr.bf16.mxu0 0
        %347 = vmatmul.mubr.bf16.gmra.mrb[0].mxu0 %v292
        %v348 = vpop.f32.mrb[0].mxu0
        %v349 = vadd.f32 %v261, %v348
        %v350 = vpop.f32.mrb[0].mxu0
        %v351 = vadd.f32 %v261, %v350
        %v352 = vpop.f32.mrb[0].mxu0
        %v353 = vadd.f32 %v266, %v352
        %v354 = vpop.f32.mrb[0].mxu0
        %v355 = vadd.f32 %v266, %v354
        %356 = vdwg.mxu0
        %vm357 = vcmp.gt.f32.partialorder %v339, 0.0
        %vm358 = vcmp.gt.f32.partialorder %v341, 0.0
        %vm359 = vcmp.gt.f32.partialorder %v343, 0.0
        %vm360 = vcmp.gt.f32.partialorder %v345, 0.0
        %vm361 = vcmp.gt.f32.partialorder %v349, 0.0
        %vm362 = vcmp.gt.f32.partialorder %v351, 0.0
        %vm363 = vcmp.gt.f32.partialorder %v353, 0.0
        %vm364 = vcmp.gt.f32.partialorder %v355, 0.0
        %v365 = vmul.f32 %v339, 0.01
        %v366 = vmul.f32 %v341, 0.01
        %v367 = vmul.f32 %v343, 0.01
        %v368 = vmul.f32 %v345, 0.01
        %v369 = vmul.f32 %v349, 0.01
        %v370 = vmul.f32 %v351, 0.01
        %v371 = vmul.f32 %v353, 0.01
        %v372 = vmul.f32 %v355, 0.01
        %v373 = vsel %vm357, %v339, %v365
        %v374 = vsel %vm358, %v341, %v366
        %v375 = vsel %vm359, %v343, %v367
        %v376 = vsel %vm360, %v345, %v368
        %v377 = vsel %vm361, %v349, %v369
        %v378 = vsel %vm362, %v351, %v370
        %v379 = vsel %vm363, %v353, %v371
        %v380 = vsel %vm364, %v355, %v372
        %381 = vst [vmem:[%s217] sm:$0xff] %v373
        %382 = vst [vmem:[%s217 + $0x8] sm:$0xff] %v374
        %383 = vst [vmem:[%s217 + $0x10] sm:$0xff] %v375
        %384 = vst [vmem:[%s217 + $0x18] sm:$0xff] %v376
        %385 = vst [vmem:[%s217 + $0x20] sm:$0xff] %v377
        %386 = vst [vmem:[%s217 + $0x28] sm:$0xff] %v378
        %387 = vst [vmem:[%s217 + $0x30] sm:$0xff] %v379
        %388 = vst [vmem:[%s217 + $0x38] sm:$0xff] %v380
        %s389 = sand.u32 %s119, 1
        %s390 = scalar_lea.sflag [#allocation3], %s389
        %s391 = sand.u32 %s119, 1
        %s392 = smul.addr %s391, 64
        %s393 = scalar_lea.vmem [#allocation2], %s392
        // Predicated region
        $region33: #{tpu_custom_call.1} parent=31 // pred_check
          %p394 = pneg %p129
        $region34: #{tpu_custom_call.1} parent=31 // pred_check_branch
          %396 = sbr.rel (%p394) target = $region36
        $region35: #{tpu_custom_call.1} parent=31 // pred_region
          %s397 = smul.u32 2, %s22
          %s399 = ssub.s32 1024, 1024
          %400 = vsyncadd %s390, %s399
          %s401 = smul.addr %s21, 8
          %s402 = sadd.s32 %s397, %s401
          %s403 = smul.addr %s402, 128
          %s404 = scalar_lea.hbm %s3, %s403
          %s405 = sshll.u32 %s393, 4
          %s406 = int_to_ptr.vmem [resolvable:$true] %s405
          %411 = dma.vmem_to_hbm [thread:$0]  %s406, 1024, %s404, %s390, 256, 256, 16
        $region36: #{tpu_custom_call.1} parent=31 // pred_fallthru
          _
      $region32: #{tpu_custom_call.1} parent=5 // pred_fallthru
        _
      %p412 = scmp.le.s32.totalorder 2, %s12
      // Predicated region
      $region37: #{tpu_custom_call.1} parent=5 // pred_check
        %p413 = pneg %p412
      $region38: #{tpu_custom_call.1} parent=5 // pred_check_branch
        %415 = sbr.rel (%p413) target = $region40
      $region39: #{tpu_custom_call.1} parent=5 // pred_region
        %s416 = ssub.s32 %s12, 2
        // Predicated region
        $region41: #{tpu_custom_call.1} parent=39 // pred_check
          %p417 = pneg %p135
        $region42: #{tpu_custom_call.1} parent=39 // pred_check_branch
          %419 = sbr.rel (%p417) target = $region44
        $region43: #{tpu_custom_call.1} parent=39 // pred_region
          %s420 = sand.u32 %s120, 1
          %s421 = scalar_lea.sflag [#allocation3], %s420
          %s422 = sand.u32 %s120, 1
          %s423 = smul.addr %s422, 64
          %s424 = scalar_lea.vmem [#allocation2], %s423
          %425 = dma.done %s421, 1024
        $region44: #{tpu_custom_call.1} parent=39 // pred_fallthru
          _
      $region40: #{tpu_custom_call.1} parent=5 // pred_fallthru
        _
    $region6: #{tpu_custom_call.1} parent=1 // loop_footer
      %s16 = sadd.s32 1, %s12
    $region7: #{tpu_custom_call.1} parent=1 // loop_footer_branch
      %11 = sbr.rel target = $region3
    $region8: #{tpu_custom_call.1} parent=1 // loop_exit
      _
    %426 = vsyncpa [#allocation3], 1
    %s427 = scalar_lea.sflag [#allocation3], 1
    %428 = vsyncpa %s427, 1

</llo_original>
